<compile_context>
chip_gen: v5e
topology: v5e:2x2
jax: 0.10.0
libtpu: 0.0.40
codegen_flags: <defaults>
</compile_context>

<pallas_src>
import numpy as np
import jax
import jax.numpy as jnp
from jax import lax
from jax.experimental import pallas as pl
from jax.experimental.pallas import tpu as pltpu

OUT_PAD = 128   # lane-dense logits slab (real logits = first 3 lanes)

# conv-slab row layout (width 144)
#   rows   0..191 : 4 pool-shifted conv1 matrices, 48 rows each  (cols 0..143)
#   rows 192..767 : 4 pool-shifted conv2 matrices, 144 rows each (cols 0..95)
#   row  768      : conv1 bias tiled over (4,6,6) NHWC            (cols 0..143)
#   row  769      : conv2 bias tiled over (2,4,12) NHWC           (cols 0..95)
WC_ROWS = 776
# fc-slab row layout (width 128)
#   rows   0..95  : fc1 weight (96,120)   rows 96..215 : fc2 weight (120,60)
#   rows 216..275 : fc3 weight (60,128 zero-padded)
#   rows 276/277/278 : fc1/fc2/fc3 biases
WF_ROWS = 280


# ----------------------------- Pallas kernel --------------------------------

def cnn_fused_kernel(x_ref, wc_ref, wf_ref, o_ref):
    """x: (TN, 48) flat input rows (batch tile, zero-padded).
    wc: (776, 144) conv slab, wf: (280, 128) fc slab (see layout above).
    o:  (TN, 128) f32 logits slab (columns >= 3 are exactly zero)."""
    x = x_ref[...]                                                   # (TN, 48)

    # ---- stage 1: conv1(2x2) + bias + relu + maxpool(2x2,s1) as 4 dense dots.
    s = jnp.dot(x, wc_ref[0:48, :], preferred_element_type=jnp.float32)
    for i in range(1, 4):
        s = jnp.maximum(
            s, jnp.dot(x, wc_ref[48 * i:48 * (i + 1), :],
                       preferred_element_type=jnp.float32))
    p1 = jnp.maximum(s + wc_ref[768:769, :], 0.0)                    # (TN, 144)

    # ---- stage 2: conv2(2x2) + bias + relu + maxpool(2x2,s1).
    s = jnp.dot(p1, wc_ref[192:336, 0:96], preferred_element_type=jnp.float32)
    for i in range(1, 4):
        r0 = 192 + 144 * i
        s = jnp.maximum(
            s, jnp.dot(p1, wc_ref[r0:r0 + 144, 0:96],
                       preferred_element_type=jnp.float32))
    p2 = jnp.maximum(s + wc_ref[769:770, 0:96], 0.0)                 # (TN, 96)

    # ---- fc chain (fc1 rows pre-permuted for the NHWC-vs-NCHW flatten).
    z = jnp.maximum(
        jnp.dot(p2, wf_ref[0:96, 0:120], preferred_element_type=jnp.float32)
        + wf_ref[276:277, 0:120], 0.0)                               # (TN, 120)
    z = jnp.maximum(
        jnp.dot(z, wf_ref[96:216, 0:60], preferred_element_type=jnp.float32)
        + wf_ref[277:278, 0:60], 0.0)                                # (TN, 60)
    o_ref[...] = (jnp.dot(z, wf_ref[216:276, :],
                          preferred_element_type=jnp.float32)
                  + wf_ref[278:279, :])                              # (TN, 128)


# ------------------------------ wrappers -------------------------------------

def prepare_params(params):
    """One-time re-layout of PyTorch-convention params into 2 kernel slabs."""
    (w1, b1, w2, b2, fc1_w, fc1_b, fc2_w, fc2_b, fc3_w, fc3_b) = (
        np.asarray(p, np.float32) for p in params)

    H, W = 6, 8
    P1H, P1W, C1 = H - 2, W - 2, 6        # pool1 output: (4, 6, 6)
    P2H, P2W, C2 = P1H - 2, P1W - 2, 12   # pool2 output: (2, 4, 12)
    shifts = [(0, 0), (0, 1), (1, 0), (1, 1)]

    # conv1 stage: for each pool shift, a (48, 144) dense matrix such that
    # x_flat @ m1[s] gives conv1 output (pre-bias) at the shifted pool window,
    # already flattened NHWC over the pooled grid.
    m1 = np.zeros((4, H * W, P1H * P1W * C1), np.float32)
    for si, (dh, dw) in enumerate(shifts):
        for ho in range(P1H):
            for wo in range(P1W):
                for c in range(C1):
                    col = (ho * P1W + wo) * C1 + c
                    for kh in range(2):
                        for kw in range(2):
                            row = (ho + dh + kh) * W + (wo + dw + kw)
                            m1[si, row, col] += w1[c, 0, kh, kw]
    b1_t = np.tile(b1, P1H * P1W)                     # (144,)

    # conv2 stage: (144, 96) per pool shift, input = pooled1 NHWC flat.
    m2 = np.zeros((4, P1H * P1W * C1, P2H * P2W * C2), np.float32)
    for si, (dh, dw) in enumerate(shifts):
        for ho in range(P2H):
            for wo in range(P2W):
                for co in range(C2):
                    col = (ho * P2W + wo) * C2 + co
                    for ci in range(C1):
                        for kh in range(2):
                            for kw in range(2):
                                row = ((ho + dh + kh) * P1W
                                       + (wo + dw + kw)) * C1 + ci
                                m2[si, row, col] += w2[co, ci, kh, kw]
    b2_t = np.tile(b2, P2H * P2W)                     # (96,)

    # fc1: permute input rows so the kernel's NHWC flatten (h,w,c) picks the
    # weight column PyTorch uses for its NCHW flatten (c,h,w).
    perm = np.array([c * (P2H * P2W) + h * P2W + w
                     for h in range(P2H) for w in range(P2W) for c in range(C2)],
                    np.int32)
    fc1_k = fc1_w[:, perm].T                          # (96, 120)
    fc2_k = fc2_w.T                                   # (120, 60)
    fc3_k = np.zeros((60, OUT_PAD), np.float32)
    fc3_k[:, :3] = fc3_w.T
    fc3_bk = np.zeros((OUT_PAD,), np.float32)
    fc3_bk[:3] = fc3_b

    # conv slab (776, 144)
    wc = np.zeros((WC_ROWS, 144), np.float32)
    for si in range(4):
        wc[48 * si:48 * (si + 1), :] = m1[si]
        wc[192 + 144 * si:192 + 144 * (si + 1), :96] = m2[si]
    wc[768, :] = b1_t
    wc[769, :96] = b2_t

    # fc slab (280, 128)
    wf = np.zeros((WF_ROWS, 128), np.float32)
    wf[0:96, :120] = fc1_k
    wf[96:216, :60] = fc2_k
    wf[216:276, :] = fc3_k
    wf[276, :120] = fc1_b
    wf[277, :60] = fc2_b
    wf[278, :] = fc3_bk

    return jnp.asarray(wc), jnp.asarray(wf)


def _round_up(n, m):
    return ((n + m - 1) // m) * m


@jax.jit
def cnn_forward(x_nchw, wc, wf):
    N, _, H, W = x_nchw.shape
    HW = H * W                                        # 48 (C == 1)

    # Per-grid-step batch tile: >=8 (sublane aligned), capped at 512 rows so
    # per-tile VMEM stays tiny on every generation (v5e 16 MiB scoped default,
    # v7x 64 MiB physical) while giving the FC dots MXU-filling M at scale.
    tile_n = min(512, _round_up(N, 8))
    n_pad = _round_up(N, tile_n)

    # C == 1: the NCHW -> NHWC flatten is a pure reshape (no transpose op).
    x_flat = x_nchw.reshape(N, HW)
    x_flat = jnp.pad(x_flat, ((0, n_pad - N), (0, 0)))

    out = pl.pallas_call(
        cnn_fused_kernel,
        out_shape=jax.ShapeDtypeStruct((n_pad, OUT_PAD), jnp.float32),
        grid=(n_pad // tile_n,),
        in_specs=[
            pl.BlockSpec((tile_n, HW), lambda i: (i, 0)),
            pl.BlockSpec((WC_ROWS, 144), lambda i: (0, 0)),   # weights resident
            pl.BlockSpec((WF_ROWS, 128), lambda i: (0, 0)),
        ],
        out_specs=pl.BlockSpec((tile_n, OUT_PAD), lambda i: (i, 0)),
        compiler_params=pltpu.CompilerParams(
            dimension_semantics=("parallel",)),
    )(x_flat, wc, wf)

    return out[:N, :3]


# --------------------------- pure-JAX reference ------------------------------

def cnn_reference(x_nchw, params):
    (w1, b1, w2, b2, fc1_w, fc1_b, fc2_w, fc2_b, fc3_w, fc3_b) = params

    def conv(x, w, b):
        dn = lax.conv_dimension_numbers(x.shape, w.shape, ('NCHW', 'OIHW', 'NCHW'))
        y = lax.conv_general_dilated(x, w, (1, 1), 'VALID', dimension_numbers=dn)
        return y + b[None, :, None, None]

    def pool(x):
        return lax.reduce_window(x, -jnp.inf, lax.max, (1, 1, 2, 2),
                                 (1, 1, 1, 1), 'VALID')

    h = pool(jnp.maximum(conv(x_nchw, w1, b1), 0.0))
    h = pool(jnp.maximum(conv(h, w2, b2), 0.0))
    h = h.reshape(x_nchw.shape[0], -1)
    h = jnp.maximum(h @ fc1_w.T + fc1_b, 0.0)
    h = jnp.maximum(h @ fc2_w.T + fc2_b, 0.0)
    return h @ fc3_w.T + fc3_b


# ---------------------------------- main -------------------------------------

if __name__ == "__main__":
    key = jax.random.PRNGKey(0)
    ks = jax.random.split(key, 11)

    def uni(k, shape, fan_in):
        bound = 1.0 / np.sqrt(fan_in)
        return jax.random.uniform(k, shape, jnp.float32, -bound, bound)

    # Parameters (PyTorch conventions: conv OIHW, linear (out,in)), deterministic.
    params = (
        uni(ks[0], (6, 1, 2, 2), 1 * 2 * 2),    # conv1.weight
        uni(ks[1], (6,), 1 * 2 * 2),            # conv1.bias
        uni(ks[2], (12, 6, 2, 2), 6 * 2 * 2),   # conv2.weight
        uni(ks[3], (12,), 6 * 2 * 2),           # conv2.bias
        uni(ks[4], (120, 96), 96),              # fc1.weight
        uni(ks[5], (120,), 96),                 # fc1.bias
        uni(ks[6], (60, 120), 120),             # fc2.weight
        uni(ks[7], (60,), 120),                 # fc2.bias
        uni(ks[8], (3, 60), 60),                # fc3.weight
        uni(ks[9], (3,), 60),                   # fc3.bias
    )

    # One-time kernel-layout conversion (outside the per-call path).
    wc_slab, wf_slab = prepare_params(params)

    # Input implied by the 12*2*4 flatten: (N, 1, 6, 8).
    x = jax.random.normal(ks[10], (2, 1, 6, 8), jnp.float32)

    out = jax.block_until_ready(cnn_forward(x, wc_slab, wf_slab))
    ref = jax.block_until_ready(cnn_reference(x, params))
    np.testing.assert_allclose(np.asarray(out), np.asarray(ref), rtol=1e-4, atol=1e-4)

    print("KERNEL_OK")
</pallas_src>

<mosaic_0001>
module attributes {stable_mosaic.version = 11 : i64} {
  func.func @cnn_fused_kernel(%arg0: i32, %arg1: memref<8x48xf32, #tpu.memory_space<vmem>>, %arg2: memref<776x144xf32, #tpu.memory_space<vmem>>, %arg3: memref<280x128xf32, #tpu.memory_space<vmem>>, %arg4: memref<8x128xf32, #tpu.memory_space<vmem>>) attributes {dimension_semantics = [#tpu.dimension_semantics<parallel>], iteration_bounds = array<i64: 1>, scalar_prefetch = 0 : i64, scratch_operands = 0 : i64, tpu.core_type = #tpu.core_type<tc>, window_params = [{transform_indices = @transform_0, window_bounds = array<i64: 8, 48>}, {pipeline_mode = #tpu.pipeline_mode<synchronous>, transform_indices = @transform_1, window_bounds = array<i64: 776, 144>}, {pipeline_mode = #tpu.pipeline_mode<synchronous>, transform_indices = @transform_2, window_bounds = array<i64: 280, 128>}, {transform_indices = @transform_3, window_bounds = array<i64: 8, 128>}]} {
    %c0 = arith.constant 0 : index
    %c0_0 = arith.constant 0 : index
    %0 = vector.load %arg1[%c0, %c0_0] : memref<8x48xf32, #tpu.memory_space<vmem>>, vector<8x48xf32>
    %c0_1 = arith.constant 0 : index
    %c0_2 = arith.constant 0 : index
    %1 = vector.load %arg2[%c0_1, %c0_2] : memref<776x144xf32, #tpu.memory_space<vmem>>, vector<48x144xf32>
    %cst = arith.constant dense<0.000000e+00> : vector<8x144xf32>
    %2 = tpu.matmul %0, %1, %cst {dimension_numbers = #tpu.dot_dimension_numbers<[1], [0], [0], [1], [0, 0, 1, 1], [], []>} : vector<8x48xf32>, vector<48x144xf32>, vector<8x144xf32> -> vector<8x144xf32>
    %c48 = arith.constant 48 : index
    %c0_3 = arith.constant 0 : index
    %3 = vector.load %arg2[%c48, %c0_3] : memref<776x144xf32, #tpu.memory_space<vmem>>, vector<48x144xf32>
    %cst_4 = arith.constant dense<0.000000e+00> : vector<8x144xf32>
    %4 = tpu.matmul %0, %3, %cst_4 {dimension_numbers = #tpu.dot_dimension_numbers<[1], [0], [0], [1], [0, 0, 1, 1], [], []>} : vector<8x48xf32>, vector<48x144xf32>, vector<8x144xf32> -> vector<8x144xf32>
    %5 = arith.maximumf %2, %4 : vector<8x144xf32>
    %c96 = arith.constant 96 : index
    %c0_5 = arith.constant 0 : index
    %6 = vector.load %arg2[%c96, %c0_5] : memref<776x144xf32, #tpu.memory_space<vmem>>, vector<48x144xf32>
    %cst_6 = arith.constant dense<0.000000e+00> : vector<8x144xf32>
    %7 = tpu.matmul %0, %6, %cst_6 {dimension_numbers = #tpu.dot_dimension_numbers<[1], [0], [0], [1], [0, 0, 1, 1], [], []>} : vector<8x48xf32>, vector<48x144xf32>, vector<8x144xf32> -> vector<8x144xf32>
    %8 = arith.maximumf %5, %7 : vector<8x144xf32>
    %c144 = arith.constant 144 : index
    %c0_7 = arith.constant 0 : index
    %9 = vector.load %arg2[%c144, %c0_7] : memref<776x144xf32, #tpu.memory_space<vmem>>, vector<48x144xf32>
    %cst_8 = arith.constant dense<0.000000e+00> : vector<8x144xf32>
    %10 = tpu.matmul %0, %9, %cst_8 {dimension_numbers = #tpu.dot_dimension_numbers<[1], [0], [0], [1], [0, 0, 1, 1], [], []>} : vector<8x48xf32>, vector<48x144xf32>, vector<8x144xf32> -> vector<8x144xf32>
    %11 = arith.maximumf %8, %10 : vector<8x144xf32>
    %c768 = arith.constant 768 : index
    %c0_9 = arith.constant 0 : index
    %12 = vector.load %arg2[%c768, %c0_9] : memref<776x144xf32, #tpu.memory_space<vmem>>, vector<1x144xf32>
    %13 = vector.broadcast %12 : vector<1x144xf32> to vector<8x144xf32>
    %14 = arith.addf %11, %13 : vector<8x144xf32>
    %cst_10 = arith.constant 0.000000e+00 : f32
    %15 = vector.broadcast %cst_10 : f32 to vector<8x144xf32>
    %16 = arith.maximumf %14, %15 : vector<8x144xf32>
    %c192 = arith.constant 192 : index
    %c0_11 = arith.constant 0 : index
    %17 = vector.load %arg2[%c192, %c0_11] : memref<776x144xf32, #tpu.memory_space<vmem>>, vector<144x96xf32>
    %cst_12 = arith.constant dense<0.000000e+00> : vector<8x96xf32>
    %18 = tpu.matmul %16, %17, %cst_12 {dimension_numbers = #tpu.dot_dimension_numbers<[1], [0], [0], [1], [0, 0, 1, 1], [], []>} : vector<8x144xf32>, vector<144x96xf32>, vector<8x96xf32> -> vector<8x96xf32>
    %c336 = arith.constant 336 : index
    %c0_13 = arith.constant 0 : index
    %19 = vector.load %arg2[%c336, %c0_13] : memref<776x144xf32, #tpu.memory_space<vmem>>, vector<144x96xf32>
    %cst_14 = arith.constant dense<0.000000e+00> : vector<8x96xf32>
    %20 = tpu.matmul %16, %19, %cst_14 {dimension_numbers = #tpu.dot_dimension_numbers<[1], [0], [0], [1], [0, 0, 1, 1], [], []>} : vector<8x144xf32>, vector<144x96xf32>, vector<8x96xf32> -> vector<8x96xf32>
    %21 = arith.maximumf %18, %20 : vector<8x96xf32>
    %c480 = arith.constant 480 : index
    %c0_15 = arith.constant 0 : index
    %22 = vector.load %arg2[%c480, %c0_15] : memref<776x144xf32, #tpu.memory_space<vmem>>, vector<144x96xf32>
    %cst_16 = arith.constant dense<0.000000e+00> : vector<8x96xf32>
    %23 = tpu.matmul %16, %22, %cst_16 {dimension_numbers = #tpu.dot_dimension_numbers<[1], [0], [0], [1], [0, 0, 1, 1], [], []>} : vector<8x144xf32>, vector<144x96xf32>, vector<8x96xf32> -> vector<8x96xf32>
    %24 = arith.maximumf %21, %23 : vector<8x96xf32>
    %c624 = arith.constant 624 : index
    %c0_17 = arith.constant 0 : index
    %25 = vector.load %arg2[%c624, %c0_17] : memref<776x144xf32, #tpu.memory_space<vmem>>, vector<144x96xf32>
    %cst_18 = arith.constant dense<0.000000e+00> : vector<8x96xf32>
    %26 = tpu.matmul %16, %25, %cst_18 {dimension_numbers = #tpu.dot_dimension_numbers<[1], [0], [0], [1], [0, 0, 1, 1], [], []>} : vector<8x144xf32>, vector<144x96xf32>, vector<8x96xf32> -> vector<8x96xf32>
    %27 = arith.maximumf %24, %26 : vector<8x96xf32>
    %c769 = arith.constant 769 : index
    %c0_19 = arith.constant 0 : index
    %28 = vector.load %arg2[%c769, %c0_19] : memref<776x144xf32, #tpu.memory_space<vmem>>, vector<1x96xf32>
    %29 = vector.broadcast %28 : vector<1x96xf32> to vector<8x96xf32>
    %30 = arith.addf %27, %29 : vector<8x96xf32>
    %cst_20 = arith.constant 0.000000e+00 : f32
    %31 = vector.broadcast %cst_20 : f32 to vector<8x96xf32>
    %32 = arith.maximumf %30, %31 : vector<8x96xf32>
    %c0_21 = arith.constant 0 : index
    %c0_22 = arith.constant 0 : index
    %33 = vector.load %arg3[%c0_21, %c0_22] : memref<280x128xf32, #tpu.memory_space<vmem>>, vector<96x120xf32>
    %cst_23 = arith.constant dense<0.000000e+00> : vector<8x120xf32>
    %34 = tpu.matmul %32, %33, %cst_23 {dimension_numbers = #tpu.dot_dimension_numbers<[1], [0], [0], [1], [0, 0, 1, 1], [], []>} : vector<8x96xf32>, vector<96x120xf32>, vector<8x120xf32> -> vector<8x120xf32>
    %c276 = arith.constant 276 : index
    %c0_24 = arith.constant 0 : index
    %35 = vector.load %arg3[%c276, %c0_24] : memref<280x128xf32, #tpu.memory_space<vmem>>, vector<1x120xf32>
    %36 = vector.broadcast %35 : vector<1x120xf32> to vector<8x120xf32>
    %37 = arith.addf %34, %36 : vector<8x120xf32>
    %cst_25 = arith.constant 0.000000e+00 : f32
    %38 = vector.broadcast %cst_25 : f32 to vector<8x120xf32>
    %39 = arith.maximumf %37, %38 : vector<8x120xf32>
    %c96_26 = arith.constant 96 : index
    %c0_27 = arith.constant 0 : index
    %40 = vector.load %arg3[%c96_26, %c0_27] : memref<280x128xf32, #tpu.memory_space<vmem>>, vector<120x60xf32>
    %cst_28 = arith.constant dense<0.000000e+00> : vector<8x60xf32>
    %41 = tpu.matmul %39, %40, %cst_28 {dimension_numbers = #tpu.dot_dimension_numbers<[1], [0], [0], [1], [0, 0, 1, 1], [], []>} : vector<8x120xf32>, vector<120x60xf32>, vector<8x60xf32> -> vector<8x60xf32>
    %c277 = arith.constant 277 : index
    %c0_29 = arith.constant 0 : index
    %42 = vector.load %arg3[%c277, %c0_29] : memref<280x128xf32, #tpu.memory_space<vmem>>, vector<1x60xf32>
    %43 = vector.broadcast %42 : vector<1x60xf32> to vector<8x60xf32>
    %44 = arith.addf %41, %43 : vector<8x60xf32>
    %cst_30 = arith.constant 0.000000e+00 : f32
    %45 = vector.broadcast %cst_30 : f32 to vector<8x60xf32>
    %46 = arith.maximumf %44, %45 : vector<8x60xf32>
    %c216 = arith.constant 216 : index
    %c0_31 = arith.constant 0 : index
    %47 = vector.load %arg3[%c216, %c0_31] : memref<280x128xf32, #tpu.memory_space<vmem>>, vector<60x128xf32>
    %cst_32 = arith.constant dense<0.000000e+00> : vector<8x128xf32>
    %48 = tpu.matmul %46, %47, %cst_32 {dimension_numbers = #tpu.dot_dimension_numbers<[1], [0], [0], [1], [0, 0, 1, 1], [], []>} : vector<8x60xf32>, vector<60x128xf32>, vector<8x128xf32> -> vector<8x128xf32>
    %c278 = arith.constant 278 : index
    %c0_33 = arith.constant 0 : index
    %49 = vector.load %arg3[%c278, %c0_33] : memref<280x128xf32, #tpu.memory_space<vmem>>, vector<1x128xf32>
    %50 = vector.broadcast %49 : vector<1x128xf32> to vector<8x128xf32>
    %51 = arith.addf %48, %50 : vector<8x128xf32>
    %c0_34 = arith.constant 0 : index
    %c0_35 = arith.constant 0 : index
    %52 = vector.load %arg4[%c0_34, %c0_35] : memref<8x128xf32, #tpu.memory_space<vmem>>, vector<8x128xf32>
    tpu.vector_store %arg4[%c0_34, %c0_35], %51 {strides = array<i32>} : memref<8x128xf32, #tpu.memory_space<vmem>>, vector<8x128xf32>,
    return
  }
  func.func @transform_0(%arg0: i32) -> (i32, i32) {
    %c0_i32 = arith.constant 0 : i32
    %c0_i32_0 = arith.constant 0 : i32
    return %arg0, %c0_i32 : i32, i32
  }
  func.func @transform_1(%arg0: i32) -> (i32, i32) {
    %c0_i32 = arith.constant 0 : i32
    %c0_i32_0 = arith.constant 0 : i32
    %c0_i32_1 = arith.constant 0 : i32
    return %c0_i32, %c0_i32_0 : i32, i32
  }
  func.func @transform_2(%arg0: i32) -> (i32, i32) {
    %c0_i32 = arith.constant 0 : i32
    %c0_i32_0 = arith.constant 0 : i32
    %c0_i32_1 = arith.constant 0 : i32
    return %c0_i32, %c0_i32_0 : i32, i32
  }
  func.func @transform_3(%arg0: i32) -> (i32, i32) {
    %c0_i32 = arith.constant 0 : i32
    %c0_i32_0 = arith.constant 0 : i32
    return %arg0, %c0_i32 : i32, i32
  }
}

</mosaic_0001>

<llo_original>
// kernel: cnn_forward.1
$region0: #{cnn_forward.1}
  #allocation0 [shape = 'u32[]', space=smem, size = 0x4, offset = 0x4, fixed_abs, tag = 'smem constant byte address 0x4 - core index']
  #allocation1 [shape = 'u32[72,128]{1,0:T(1,128)}', space=vmem, size = 0x9000, scoped, tag = 'internal scratch']
  %s0 = inlined_call_operand.vmem [shape: f32[8,48], index: 0, kind: input, shape index: {}]
  %s1 = inlined_call_operand.vmem [shape: f32[776,144], index: 1, kind: input, shape index: {}]
  %s2 = inlined_call_operand.vmem [shape: f32[280,128], index: 2, kind: input, shape index: {}]
  %s3 = inlined_call_operand.vmem [shape: f32[8,128], index: 3, kind: output, shape index: {}]
  %s4 = sld [smem:[#allocation0]]
  $region22: #{cnn_forward.1} parent=0
    _
  %s6 = ssub.s32 1, %s4
  %s7 = scalar_select 0, %s6, %s4
  // Predicated region
  $region2: #{cnn_forward.1} parent=0 // pred_check
    _
  $region3: #{cnn_forward.1} parent=0 // pred_check_branch
    %9 = sbr.rel (0) target = $region5
  $region4: #{cnn_forward.1} parent=0 // pred_region
    _
  $region5: #{cnn_forward.1} parent=0 // pred_fallthru
    _
  // Predicated region
  $region6: #{cnn_forward.1} parent=0 // pred_check
    _
  $region7: #{cnn_forward.1} parent=0 // pred_check_branch
    %11 = sbr.rel (0) target = $region9
  $region8: #{cnn_forward.1} parent=0 // pred_region
    _
  $region9: #{cnn_forward.1} parent=0 // pred_fallthru
    _
  // Predicated region
  $region10: #{cnn_forward.1} parent=0 // pred_check
    _
  $region11: #{cnn_forward.1} parent=0 // pred_check_branch
    %13 = sbr.rel (0) target = $region13
  $region12: #{cnn_forward.1} parent=0 // pred_region
    _
  $region13: #{cnn_forward.1} parent=0 // pred_fallthru
    _
  %v14 = vld [vmem:[%s0] sm:$0xff]
  %v15 = vld [vmem:[%s1] sm:$0xff]
  %v16 = vld [vmem:[%s1 + $0x8] sm:$0xff]
  %v17 = vld [vmem:[%s1 + $0x10] sm:$0xff]
  %v18 = vld [vmem:[%s1 + $0x18] sm:$0xff]
  %v19 = vld [vmem:[%s1 + $0x20] sm:$0xff]
  %v20 = vld [vmem:[%s1 + $0x28] sm:$0xff]
  %v21 = vld [vmem:[%s1 + $0x30] sm:$0xff]
  %v22 = vld [vmem:[%s1 + $0x38] sm:$0xff]
  %v23 = vld [vmem:[%s1 + $0x40] sm:$0xff]
  %v24 = vld [vmem:[%s1 + $0x48] sm:$0xff]
  %v25 = vld [vmem:[%s1 + $0x50] sm:$0xff]
  %v26 = vld [vmem:[%s1 + $0x58] sm:$0xff]
  %vm27 = vcmask 392192
  %v29 = vsel %vm27, %v14, 0
  %31 = vmatpush.msra.mxu0 0.0
  %32 = vmatpush.msra.mxu0 0.0
  %33 = vmatpush.msra.mxu0 0.0
  %34 = vmatpush.msra.mxu0 0.0
  %35 = vmatpush.msra.mxu0 0.0
  %36 = vmatpush.msra.mxu0 0.0
  %37 = vmatpush.msra.mxu0 0.0
  %38 = vmatpush.msra.mxu0 0.0
  %39 = vmatpush.msra.mxu0 0.0
  %40 = vmatpush.msra.mxu0 0.0
  %41 = vmatpush.msra.mxu0 %v25
  %42 = vmatpush.msra.mxu0 %v23
  %43 = vmatpush.msra.mxu0 %v21
  %44 = vmatpush.msra.mxu0 %v19
  %45 = vmatpush.msra.mxu0 %v17
  %46 = vmatpush.msra.mxu0 %v15
  %47 = vmatmul.f32.gmra.mxu0 %v29
  %v48 = vpop.f32.mrf.mxu0
  %v49 = vadd.f32 0.0, %v48
  %50 = vdwg.mxu0
  %51 = vmatpush.msra.mxu0 0.0
  %52 = vmatpush.msra.mxu0 0.0
  %53 = vmatpush.msra.mxu0 0.0
  %54 = vmatpush.msra.mxu0 0.0
  %55 = vmatpush.msra.mxu0 0.0
  %56 = vmatpush.msra.mxu0 0.0
  %57 = vmatpush.msra.mxu0 0.0
  %58 = vmatpush.msra.mxu0 0.0
  %59 = vmatpush.msra.mxu0 0.0
  %60 = vmatpush.msra.mxu0 0.0
  %61 = vmatpush.msra.mxu0 %v26
  %62 = vmatpush.msra.mxu0 %v24
  %63 = vmatpush.msra.mxu0 %v22
  %64 = vmatpush.msra.mxu0 %v20
  %65 = vmatpush.msra.mxu0 %v18
  %66 = vmatpush.msra.mxu0 %v16
  %67 = vmatmul.f32.gmra.mxu0 %v29
  %v68 = vpop.f32.mrf.mxu0
  %v69 = vadd.f32 0.0, %v68
  %70 = vdwg.mxu0
  %v71 = vld [vmem:[%s1 + $0x60] sm:$0xff]
  %v72 = vld [vmem:[%s1 + $0x68] sm:$0xff]
  %v73 = vld [vmem:[%s1 + $0x70] sm:$0xff]
  %v74 = vld [vmem:[%s1 + $0x78] sm:$0xff]
  %v75 = vld [vmem:[%s1 + $0x80] sm:$0xff]
  %v76 = vld [vmem:[%s1 + $0x88] sm:$0xff]
  %v77 = vld [vmem:[%s1 + $0x90] sm:$0xff]
  %v78 = vld [vmem:[%s1 + $0x98] sm:$0xff]
  %v79 = vld [vmem:[%s1 + $0xa0] sm:$0xff]
  %v80 = vld [vmem:[%s1 + $0xa8] sm:$0xff]
  %v81 = vld [vmem:[%s1 + $0xb0] sm:$0xff]
  %v82 = vld [vmem:[%s1 + $0xb8] sm:$0xff]
  %83 = vmatpush.msra.mxu0 0.0
  %84 = vmatpush.msra.mxu0 0.0
  %85 = vmatpush.msra.mxu0 0.0
  %86 = vmatpush.msra.mxu0 0.0
  %87 = vmatpush.msra.mxu0 0.0
  %88 = vmatpush.msra.mxu0 0.0
  %89 = vmatpush.msra.mxu0 0.0
  %90 = vmatpush.msra.mxu0 0.0
  %91 = vmatpush.msra.mxu0 0.0
  %92 = vmatpush.msra.mxu0 0.0
  %93 = vmatpush.msra.mxu0 %v81
  %94 = vmatpush.msra.mxu0 %v79
  %95 = vmatpush.msra.mxu0 %v77
  %96 = vmatpush.msra.mxu0 %v75
  %97 = vmatpush.msra.mxu0 %v73
  %98 = vmatpush.msra.mxu0 %v71
  %99 = vmatmul.f32.gmra.mxu0 %v29
  %v100 = vpop.f32.mrf.mxu0
  %v101 = vadd.f32 0.0, %v100
  %102 = vdwg.mxu0
  %103 = vmatpush.msra.mxu0 0.0
  %104 = vmatpush.msra.mxu0 0.0
  %105 = vmatpush.msra.mxu0 0.0
  %106 = vmatpush.msra.mxu0 0.0
  %107 = vmatpush.msra.mxu0 0.0
  %108 = vmatpush.msra.mxu0 0.0
  %109 = vmatpush.msra.mxu0 0.0
  %110 = vmatpush.msra.mxu0 0.0
  %111 = vmatpush.msra.mxu0 0.0
  %112 = vmatpush.msra.mxu0 0.0
  %113 = vmatpush.msra.mxu0 %v82
  %114 = vmatpush.msra.mxu0 %v80
  %115 = vmatpush.msra.mxu0 %v78
  %116 = vmatpush.msra.mxu0 %v76
  %117 = vmatpush.msra.mxu0 %v74
  %118 = vmatpush.msra.mxu0 %v72
  %119 = vmatmul.f32.gmra.mxu0 %v29
  %v120 = vpop.f32.mrf.mxu0
  %v121 = vadd.f32 0.0, %v120
  %122 = vdwg.mxu0
  %v123 = vmax.f32 %v49, %v101
  %v124 = vmax.f32 %v69, %v121
  %v125 = vld [vmem:[%s1 + $0xc0] sm:$0xff]
  %v126 = vld [vmem:[%s1 + $0xc8] sm:$0xff]
  %v127 = vld [vmem:[%s1 + $0xd0] sm:$0xff]
  %v128 = vld [vmem:[%s1 + $0xd8] sm:$0xff]
  %v129 = vld [vmem:[%s1 + $0xe0] sm:$0xff]
  %v130 = vld [vmem:[%s1 + $0xe8] sm:$0xff]
  %v131 = vld [vmem:[%s1 + $0xf0] sm:$0xff]
  %v132 = vld [vmem:[%s1 + $0xf8] sm:$0xff]
  %v133 = vld [vmem:[%s1 + $0x100] sm:$0xff]
  %v134 = vld [vmem:[%s1 + $0x108] sm:$0xff]
  %v135 = vld [vmem:[%s1 + $0x110] sm:$0xff]
  %v136 = vld [vmem:[%s1 + $0x118] sm:$0xff]
  %137 = vmatpush.msra.mxu0 0.0
  %138 = vmatpush.msra.mxu0 0.0
  %139 = vmatpush.msra.mxu0 0.0
  %140 = vmatpush.msra.mxu0 0.0
  %141 = vmatpush.msra.mxu0 0.0
  %142 = vmatpush.msra.mxu0 0.0
  %143 = vmatpush.msra.mxu0 0.0
  %144 = vmatpush.msra.mxu0 0.0
  %145 = vmatpush.msra.mxu0 0.0
  %146 = vmatpush.msra.mxu0 0.0
  %147 = vmatpush.msra.mxu0 %v135
  %148 = vmatpush.msra.mxu0 %v133
  %149 = vmatpush.msra.mxu0 %v131
  %150 = vmatpush.msra.mxu0 %v129
  %151 = vmatpush.msra.mxu0 %v127
  %152 = vmatpush.msra.mxu0 %v125
  %153 = vmatmul.f32.gmra.mxu0 %v29
  %v154 = vpop.f32.mrf.mxu0
  %v155 = vadd.f32 0.0, %v154
  %156 = vdwg.mxu0
  %157 = vmatpush.msra.mxu0 0.0
  %158 = vmatpush.msra.mxu0 0.0
  %159 = vmatpush.msra.mxu0 0.0
  %160 = vmatpush.msra.mxu0 0.0
  %161 = vmatpush.msra.mxu0 0.0
  %162 = vmatpush.msra.mxu0 0.0
  %163 = vmatpush.msra.mxu0 0.0
  %164 = vmatpush.msra.mxu0 0.0
  %165 = vmatpush.msra.mxu0 0.0
  %166 = vmatpush.msra.mxu0 0.0
  %167 = vmatpush.msra.mxu0 %v136
  %168 = vmatpush.msra.mxu0 %v134
  %169 = vmatpush.msra.mxu0 %v132
  %170 = vmatpush.msra.mxu0 %v130
  %171 = vmatpush.msra.mxu0 %v128
  %172 = vmatpush.msra.mxu0 %v126
  %173 = vmatmul.f32.gmra.mxu0 %v29
  %v174 = vpop.f32.mrf.mxu0
  %v175 = vadd.f32 0.0, %v174
  %176 = vdwg.mxu0
  %v177 = vmax.f32 %v123, %v155
  %v178 = vmax.f32 %v124, %v175
  %v179 = vld [vmem:[%s1 + $0x120] sm:$0xff]
  %v180 = vld [vmem:[%s1 + $0x128] sm:$0xff]
  %v181 = vld [vmem:[%s1 + $0x130] sm:$0xff]
  %v182 = vld [vmem:[%s1 + $0x138] sm:$0xff]
  %v183 = vld [vmem:[%s1 + $0x140] sm:$0xff]
  %v184 = vld [vmem:[%s1 + $0x148] sm:$0xff]
  %v185 = vld [vmem:[%s1 + $0x150] sm:$0xff]
  %v186 = vld [vmem:[%s1 + $0x158] sm:$0xff]
  %v187 = vld [vmem:[%s1 + $0x160] sm:$0xff]
  %v188 = vld [vmem:[%s1 + $0x168] sm:$0xff]
  %v189 = vld [vmem:[%s1 + $0x170] sm:$0xff]
  %v190 = vld [vmem:[%s1 + $0x178] sm:$0xff]
  %191 = vmatpush.msra.mxu0 0.0
  %192 = vmatpush.msra.mxu0 0.0
  %193 = vmatpush.msra.mxu0 0.0
  %194 = vmatpush.msra.mxu0 0.0
  %195 = vmatpush.msra.mxu0 0.0
  %196 = vmatpush.msra.mxu0 0.0
  %197 = vmatpush.msra.mxu0 0.0
  %198 = vmatpush.msra.mxu0 0.0
  %199 = vmatpush.msra.mxu0 0.0
  %200 = vmatpush.msra.mxu0 0.0
  %201 = vmatpush.msra.mxu0 %v189
  %202 = vmatpush.msra.mxu0 %v187
  %203 = vmatpush.msra.mxu0 %v185
  %204 = vmatpush.msra.mxu0 %v183
  %205 = vmatpush.msra.mxu0 %v181
  %206 = vmatpush.msra.mxu0 %v179
  %207 = vmatmul.f32.gmra.mxu0 %v29
  %v208 = vpop.f32.mrf.mxu0
  %v209 = vadd.f32 0.0, %v208
  %210 = vdwg.mxu0
  %211 = vmatpush.msra.mxu0 0.0
  %212 = vmatpush.msra.mxu0 0.0
  %213 = vmatpush.msra.mxu0 0.0
  %214 = vmatpush.msra.mxu0 0.0
  %215 = vmatpush.msra.mxu0 0.0
  %216 = vmatpush.msra.mxu0 0.0
  %217 = vmatpush.msra.mxu0 0.0
  %218 = vmatpush.msra.mxu0 0.0
  %219 = vmatpush.msra.mxu0 0.0
  %220 = vmatpush.msra.mxu0 0.0
  %221 = vmatpush.msra.mxu0 %v190
  %222 = vmatpush.msra.mxu0 %v188
  %223 = vmatpush.msra.mxu0 %v186
  %224 = vmatpush.msra.mxu0 %v184
  %225 = vmatpush.msra.mxu0 %v182
  %226 = vmatpush.msra.mxu0 %v180
  %227 = vmatmul.f32.gmra.mxu0 %v29
  %v228 = vpop.f32.mrf.mxu0
  %v229 = vadd.f32 0.0, %v228
  %230 = vdwg.mxu0
  %v231 = vmax.f32 %v177, %v209
  %v232 = vmax.f32 %v178, %v229
  %s233 = scalar_lea.vmem %s1, 1536
  %v234 = vld [vmem:[%s233] ss:$8 sm:$0x3]
  %v236 = vperm.slane %v234, 0
  %v237 = vperm.slane %v234, 1
  %v240 = vadd.f32 %v231, %v236
  %v241 = vadd.f32 %v232, %v237
  %v242 = vmax.f32 %v240, 0.0
  %v243 = vmax.f32 %v241, 0.0
  %v244 = vld [vmem:[%s1 + $0x180] sm:$0xff]
  %v245 = vld [vmem:[%s1 + $0x190] sm:$0xff]
  %v246 = vld [vmem:[%s1 + $0x1a0] sm:$0xff]
  %v247 = vld [vmem:[%s1 + $0x1b0] sm:$0xff]
  %v248 = vld [vmem:[%s1 + $0x1c0] sm:$0xff]
  %v249 = vld [vmem:[%s1 + $0x1d0] sm:$0xff]
  %v250 = vld [vmem:[%s1 + $0x1e0] sm:$0xff]
  %v251 = vld [vmem:[%s1 + $0x1f0] sm:$0xff]
  %v252 = vld [vmem:[%s1 + $0x200] sm:$0xff]
  %v253 = vld [vmem:[%s1 + $0x210] sm:$0xff]
  %v254 = vld [vmem:[%s1 + $0x220] sm:$0xff]
  %v255 = vld [vmem:[%s1 + $0x230] sm:$0xff]
  %v256 = vld [vmem:[%s1 + $0x240] sm:$0xff]
  %v257 = vld [vmem:[%s1 + $0x250] sm:$0xff]
  %v258 = vld [vmem:[%s1 + $0x260] sm:$0xff]
  %v259 = vld [vmem:[%s1 + $0x270] sm:$0xff]
  %v260 = vld [vmem:[%s1 + $0x280] sm:$0xff]
  %v261 = vld [vmem:[%s1 + $0x290] sm:$0xff]
  %vm262 = vcmask 130048
  %v264 = vsel %vm262, %v243, 0
  %266 = vmatpush.msra.mxu0 %v259
  %267 = vmatpush.msra.mxu0 %v258
  %268 = vmatpush.msra.mxu0 %v257
  %269 = vmatpush.msra.mxu0 %v256
  %270 = vmatpush.msra.mxu0 %v255
  %271 = vmatpush.msra.mxu0 %v254
  %272 = vmatpush.msra.mxu0 %v253
  %273 = vmatpush.msra.mxu0 %v252
  %274 = vmatpush.msra.mxu0 %v251
  %275 = vmatpush.msra.mxu0 %v250
  %276 = vmatpush.msra.mxu0 %v249
  %277 = vmatpush.msra.mxu0 %v248
  %278 = vmatpush.msra.mxu0 %v247
  %279 = vmatpush.msra.mxu0 %v246
  %280 = vmatpush.msra.mxu0 %v245
  %281 = vmatpush.msra.mxu0 %v244
  %282 = vmatmul.f32.gmra.mxu0 %v242
  %v283 = vpop.f32.mrf.mxu0
  %v284 = vadd.f32 0.0, %v283
  %285 = vdwg.mxu0
  %286 = vmatpush.msra.mxu0 0.0
  %287 = vmatpush.msra.mxu0 0.0
  %288 = vmatpush.msra.mxu0 0.0
  %289 = vmatpush.msra.mxu0 0.0
  %290 = vmatpush.msra.mxu0 0.0
  %291 = vmatpush.msra.mxu0 0.0
  %292 = vmatpush.msra.mxu0 0.0
  %293 = vmatpush.msra.mxu0 0.0
  %294 = vmatpush.msra.mxu0 0.0
  %295 = vmatpush.msra.mxu0 0.0
  %296 = vmatpush.msra.mxu0 0.0
  %297 = vmatpush.msra.mxu0 0.0
  %298 = vmatpush.msra.mxu0 0.0
  %299 = vmatpush.msra.mxu0 0.0
  %300 = vmatpush.msra.mxu0 %v261
  %301 = vmatpush.msra.mxu0 %v260
  %302 = vmatmul.f32.gmra.mxu0 %v264
  %v303 = vpop.f32.mrf.mxu0
  %v304 = vadd.f32 %v284, %v303
  %305 = vdwg.mxu0
  %v306 = vld [vmem:[%s1 + $0x2a0] sm:$0xff]
  %v307 = vld [vmem:[%s1 + $0x2b0] sm:$0xff]
  %v308 = vld [vmem:[%s1 + $0x2c0] sm:$0xff]
  %v309 = vld [vmem:[%s1 + $0x2d0] sm:$0xff]
  %v310 = vld [vmem:[%s1 + $0x2e0] sm:$0xff]
  %v311 = vld [vmem:[%s1 + $0x2f0] sm:$0xff]
  %v312 = vld [vmem:[%s1 + $0x300] sm:$0xff]
  %v313 = vld [vmem:[%s1 + $0x310] sm:$0xff]
  %v314 = vld [vmem:[%s1 + $0x320] sm:$0xff]
  %v315 = vld [vmem:[%s1 + $0x330] sm:$0xff]
  %v316 = vld [vmem:[%s1 + $0x340] sm:$0xff]
  %v317 = vld [vmem:[%s1 + $0x350] sm:$0xff]
  %v318 = vld [vmem:[%s1 + $0x360] sm:$0xff]
  %v319 = vld [vmem:[%s1 + $0x370] sm:$0xff]
  %v320 = vld [vmem:[%s1 + $0x380] sm:$0xff]
  %v321 = vld [vmem:[%s1 + $0x390] sm:$0xff]
  %v322 = vld [vmem:[%s1 + $0x3a0] sm:$0xff]
  %v323 = vld [vmem:[%s1 + $0x3b0] sm:$0xff]
  %324 = vmatpush.msra.mxu0 %v321
  %325 = vmatpush.msra.mxu0 %v320
  %326 = vmatpush.msra.mxu0 %v319
  %327 = vmatpush.msra.mxu0 %v318
  %328 = vmatpush.msra.mxu0 %v317
  %329 = vmatpush.msra.mxu0 %v316
  %330 = vmatpush.msra.mxu0 %v315
  %331 = vmatpush.msra.mxu0 %v314
  %332 = vmatpush.msra.mxu0 %v313
  %333 = vmatpush.msra.mxu0 %v312
  %334 = vmatpush.msra.mxu0 %v311
  %335 = vmatpush.msra.mxu0 %v310
  %336 = vmatpush.msra.mxu0 %v309
  %337 = vmatpush.msra.mxu0 %v308
  %338 = vmatpush.msra.mxu0 %v307
  %339 = vmatpush.msra.mxu0 %v306
  %340 = vmatmul.f32.gmra.mxu0 %v242
  %v341 = vpop.f32.mrf.mxu0
  %v342 = vadd.f32 0.0, %v341
  %343 = vdwg.mxu0
  %344 = vmatpush.msra.mxu0 0.0
  %345 = vmatpush.msra.mxu0 0.0
  %346 = vmatpush.msra.mxu0 0.0
  %347 = vmatpush.msra.mxu0 0.0
  %348 = vmatpush.msra.mxu0 0.0
  %349 = vmatpush.msra.mxu0 0.0
  %350 = vmatpush.msra.mxu0 0.0
  %351 = vmatpush.msra.mxu0 0.0
  %352 = vmatpush.msra.mxu0 0.0
  %353 = vmatpush.msra.mxu0 0.0
  %354 = vmatpush.msra.mxu0 0.0
  %355 = vmatpush.msra.mxu0 0.0
  %356 = vmatpush.msra.mxu0 0.0
  %357 = vmatpush.msra.mxu0 0.0
  %358 = vmatpush.msra.mxu0 %v323
  %359 = vmatpush.msra.mxu0 %v322
  %360 = vmatmul.f32.gmra.mxu0 %v264
  %v361 = vpop.f32.mrf.mxu0
  %v362 = vadd.f32 %v342, %v361
  %363 = vdwg.mxu0
  %v364 = vmax.f32 %v304, %v362
  %v365 = vld [vmem:[%s1 + $0x3c0] sm:$0xff]
  %v366 = vld [vmem:[%s1 + $0x3d0] sm:$0xff]
  %v367 = vld [vmem:[%s1 + $0x3e0] sm:$0xff]
  %v368 = vld [vmem:[%s1 + $0x3f0] sm:$0xff]
  %v369 = vld [vmem:[%s1 + $0x400] sm:$0xff]
  %v370 = vld [vmem:[%s1 + $0x410] sm:$0xff]
  %v371 = vld [vmem:[%s1 + $0x420] sm:$0xff]
  %v372 = vld [vmem:[%s1 + $0x430] sm:$0xff]
  %v373 = vld [vmem:[%s1 + $0x440] sm:$0xff]
  %v374 = vld [vmem:[%s1 + $0x450] sm:$0xff]
  %v375 = vld [vmem:[%s1 + $0x460] sm:$0xff]
  %v376 = vld [vmem:[%s1 + $0x470] sm:$0xff]
  %v377 = vld [vmem:[%s1 + $0x480] sm:$0xff]
  %v378 = vld [vmem:[%s1 + $0x490] sm:$0xff]
  %v379 = vld [vmem:[%s1 + $0x4a0] sm:$0xff]
  %v380 = vld [vmem:[%s1 + $0x4b0] sm:$0xff]
  %v381 = vld [vmem:[%s1 + $0x4c0] sm:$0xff]
  %v382 = vld [vmem:[%s1 + $0x4d0] sm:$0xff]
  %383 = vmatpush.msra.mxu0 %v380
  %384 = vmatpush.msra.mxu0 %v379
  %385 = vmatpush.msra.mxu0 %v378
  %386 = vmatpush.msra.mxu0 %v377
  %387 = vmatpush.msra.mxu0 %v376
  %388 = vmatpush.msra.mxu0 %v375
  %389 = vmatpush.msra.mxu0 %v374
  %390 = vmatpush.msra.mxu0 %v373
  %391 = vmatpush.msra.mxu0 %v372
  %392 = vmatpush.msra.mxu0 %v371
  %393 = vmatpush.msra.mxu0 %v370
  %394 = vmatpush.msra.mxu0 %v369
  %395 = vmatpush.msra.mxu0 %v368
  %396 = vmatpush.msra.mxu0 %v367
  %397 = vmatpush.msra.mxu0 %v366
  %398 = vmatpush.msra.mxu0 %v365
  %399 = vmatmul.f32.gmra.mxu0 %v242
  %v400 = vpop.f32.mrf.mxu0
  %v401 = vadd.f32 0.0, %v400
  %402 = vdwg.mxu0
  %403 = vmatpush.msra.mxu0 0.0
  %404 = vmatpush.msra.mxu0 0.0
  %405 = vmatpush.msra.mxu0 0.0
  %406 = vmatpush.msra.mxu0 0.0
  %407 = vmatpush.msra.mxu0 0.0
  %408 = vmatpush.msra.mxu0 0.0
  %409 = vmatpush.msra.mxu0 0.0
  %410 = vmatpush.msra.mxu0 0.0
  %411 = vmatpush.msra.mxu0 0.0
  %412 = vmatpush.msra.mxu0 0.0
  %413 = vmatpush.msra.mxu0 0.0
  %414 = vmatpush.msra.mxu0 0.0
  %415 = vmatpush.msra.mxu0 0.0
  %416 = vmatpush.msra.mxu0 0.0
  %417 = vmatpush.msra.mxu0 %v382
  %418 = vmatpush.msra.mxu0 %v381
  %419 = vmatmul.f32.gmra.mxu0 %v264
  %v420 = vpop.f32.mrf.mxu0
  %v421 = vadd.f32 %v401, %v420
  %422 = vdwg.mxu0
  %v423 = vmax.f32 %v364, %v421
  %v424 = vld [vmem:[%s1 + $0x4e0] sm:$0xff]
  %v425 = vld [vmem:[%s1 + $0x4f0] sm:$0xff]
  %v426 = vld [vmem:[%s1 + $0x500] sm:$0xff]
  %v427 = vld [vmem:[%s1 + $0x510] sm:$0xff]
  %v428 = vld [vmem:[%s1 + $0x520] sm:$0xff]
  %v429 = vld [vmem:[%s1 + $0x530] sm:$0xff]
  %v430 = vld [vmem:[%s1 + $0x540] sm:$0xff]
  %v431 = vld [vmem:[%s1 + $0x550] sm:$0xff]
  %v432 = vld [vmem:[%s1 + $0x560] sm:$0xff]
  %v433 = vld [vmem:[%s1 + $0x570] sm:$0xff]
  %v434 = vld [vmem:[%s1 + $0x580] sm:$0xff]
  %v435 = vld [vmem:[%s1 + $0x590] sm:$0xff]
  %v436 = vld [vmem:[%s1 + $0x5a0] sm:$0xff]
  %v437 = vld [vmem:[%s1 + $0x5b0] sm:$0xff]
  %v438 = vld [vmem:[%s1 + $0x5c0] sm:$0xff]
  %v439 = vld [vmem:[%s1 + $0x5d0] sm:$0xff]
  %v440 = vld [vmem:[%s1 + $0x5e0] sm:$0xff]
  %v441 = vld [vmem:[%s1 + $0x5f0] sm:$0xff]
  %442 = vmatpush.msra.mxu0 %v439
  %443 = vmatpush.msra.mxu0 %v438
  %444 = vmatpush.msra.mxu0 %v437
  %445 = vmatpush.msra.mxu0 %v436
  %446 = vmatpush.msra.mxu0 %v435
  %447 = vmatpush.msra.mxu0 %v434
  %448 = vmatpush.msra.mxu0 %v433
  %449 = vmatpush.msra.mxu0 %v432
  %450 = vmatpush.msra.mxu0 %v431
  %451 = vmatpush.msra.mxu0 %v430
  %452 = vmatpush.msra.mxu0 %v429
  %453 = vmatpush.msra.mxu0 %v428
  %454 = vmatpush.msra.mxu0 %v427
  %455 = vmatpush.msra.mxu0 %v426
  %456 = vmatpush.msra.mxu0 %v425
  %457 = vmatpush.msra.mxu0 %v424
  %458 = vmatmul.f32.gmra.mxu0 %v242
  %v459 = vpop.f32.mrf.mxu0
  %v460 = vadd.f32 0.0, %v459
  %461 = vdwg.mxu0
  %462 = vmatpush.msra.mxu0 0.0
  %463 = vmatpush.msra.mxu0 0.0
  %464 = vmatpush.msra.mxu0 0.0
  %465 = vmatpush.msra.mxu0 0.0
  %466 = vmatpush.msra.mxu0 0.0
  %467 = vmatpush.msra.mxu0 0.0
  %468 = vmatpush.msra.mxu0 0.0
  %469 = vmatpush.msra.mxu0 0.0
  %470 = vmatpush.msra.mxu0 0.0
  %471 = vmatpush.msra.mxu0 0.0
  %472 = vmatpush.msra.mxu0 0.0
  %473 = vmatpush.msra.mxu0 0.0
  %474 = vmatpush.msra.mxu0 0.0
  %475 = vmatpush.msra.mxu0 0.0
  %476 = vmatpush.msra.mxu0 %v441
  %477 = vmatpush.msra.mxu0 %v440
  %478 = vmatmul.f32.gmra.mxu0 %v264
  %v479 = vpop.f32.mrf.mxu0
  %v480 = vadd.f32 %v460, %v479
  %481 = vdwg.mxu0
  %v482 = vmax.f32 %v423, %v480
  %v483 = vld [vmem:[%s1 + $0x601] ss:$0 sm:$0xff]
  %v484 = vadd.f32 %v482, %v483
  %v485 = vmax.f32 %v484, 0.0
  %v486 = vld [vmem:[%s2] sm:$0xff]
  %v487 = vld [vmem:[%s2 + $0x8] sm:$0xff]
  %v488 = vld [vmem:[%s2 + $0x10] sm:$0xff]
  %v489 = vld [vmem:[%s2 + $0x18] sm:$0xff]
  %v490 = vld [vmem:[%s2 + $0x20] sm:$0xff]
  %v491 = vld [vmem:[%s2 + $0x28] sm:$0xff]
  %v492 = vld [vmem:[%s2 + $0x30] sm:$0xff]
  %v493 = vld [vmem:[%s2 + $0x38] sm:$0xff]
  %v494 = vld [vmem:[%s2 + $0x40] sm:$0xff]
  %v495 = vld [vmem:[%s2 + $0x48] sm:$0xff]
  %v496 = vld [vmem:[%s2 + $0x50] sm:$0xff]
  %v497 = vld [vmem:[%s2 + $0x58] sm:$0xff]
  %v498 = vld [vmem:[%s2 + $0x114] sm:$0x1]
  %v499 = vperm.slane %v498, 0
  %vm500 = vcmask 785408
  %v502 = vsel %vm500, %v485, 0
  %504 = vmatpush.msra.mxu0 0.0
  %505 = vmatpush.msra.mxu0 0.0
  %506 = vmatpush.msra.mxu0 0.0
  %507 = vmatpush.msra.mxu0 0.0
  %508 = vmatpush.msra.mxu0 %v497
  %509 = vmatpush.msra.mxu0 %v496
  %510 = vmatpush.msra.mxu0 %v495
  %511 = vmatpush.msra.mxu0 %v494
  %512 = vmatpush.msra.mxu0 %v493
  %513 = vmatpush.msra.mxu0 %v492
  %514 = vmatpush.msra.mxu0 %v491
  %515 = vmatpush.msra.mxu0 %v490
  %516 = vmatpush.msra.mxu0 %v489
  %517 = vmatpush.msra.mxu0 %v488
  %518 = vmatpush.msra.mxu0 %v487
  %519 = vmatpush.msra.mxu0 %v486
  %520 = vmatmul.f32.gmra.mxu0 %v502
  %v521 = vpop.f32.mrf.mxu0
  %v522 = vadd.f32 %v499, %v521
  %523 = vdwg.mxu0
  %v524 = vmax.f32 %v522, 0.0
  %v525 = vld [vmem:[%s2 + $0x60] sm:$0xff]
  %v526 = vld [vmem:[%s2 + $0x68] sm:$0xff]
  %v527 = vld [vmem:[%s2 + $0x70] sm:$0xff]
  %v528 = vld [vmem:[%s2 + $0x78] sm:$0xff]
  %v529 = vld [vmem:[%s2 + $0x80] sm:$0xff]
  %v530 = vld [vmem:[%s2 + $0x88] sm:$0xff]
  %v531 = vld [vmem:[%s2 + $0x90] sm:$0xff]
  %v532 = vld [vmem:[%s2 + $0x98] sm:$0xff]
  %v533 = vld [vmem:[%s2 + $0xa0] sm:$0xff]
  %v534 = vld [vmem:[%s2 + $0xa8] sm:$0xff]
  %v535 = vld [vmem:[%s2 + $0xb0] sm:$0xff]
  %v536 = vld [vmem:[%s2 + $0xb8] sm:$0xff]
  %v537 = vld [vmem:[%s2 + $0xc0] sm:$0xff]
  %v538 = vld [vmem:[%s2 + $0xc8] sm:$0xff]
  %v539 = vld [vmem:[%s2 + $0xd0] sm:$0xff]
  %v540 = vld [vmem:[%s2 + $0x115] sm:$0x1]
  %v541 = vperm.slane %v540, 0
  %vm542 = vcmask 982016
  %v544 = vsel %vm542, %v524, 0
  %546 = vmatpush.msra.mxu0 0.0
  %547 = vmatpush.msra.mxu0 %v539
  %548 = vmatpush.msra.mxu0 %v538
  %549 = vmatpush.msra.mxu0 %v537
  %550 = vmatpush.msra.mxu0 %v536
  %551 = vmatpush.msra.mxu0 %v535
  %552 = vmatpush.msra.mxu0 %v534
  %553 = vmatpush.msra.mxu0 %v533
  %554 = vmatpush.msra.mxu0 %v532
  %555 = vmatpush.msra.mxu0 %v531
  %556 = vmatpush.msra.mxu0 %v530
  %557 = vmatpush.msra.mxu0 %v529
  %558 = vmatpush.msra.mxu0 %v528
  %559 = vmatpush.msra.mxu0 %v527
  %560 = vmatpush.msra.mxu0 %v526
  %561 = vmatpush.msra.mxu0 %v525
  %562 = vmatmul.f32.gmra.mxu0 %v544
  %v563 = vpop.f32.mrf.mxu0
  %v564 = vadd.f32 %v541, %v563
  %565 = vdwg.mxu0
  %v566 = vmax.f32 %v564, 0.0
  %v567 = vld [vmem:[%s2 + $0xd8] sm:$0xff]
  %v568 = vld [vmem:[%s2 + $0xe0] sm:$0xff]
  %v569 = vld [vmem:[%s2 + $0xe8] sm:$0xff]
  %v570 = vld [vmem:[%s2 + $0xf0] sm:$0xff]
  %v571 = vld [vmem:[%s2 + $0xf8] sm:$0xff]
  %v572 = vld [vmem:[%s2 + $0x100] sm:$0xff]
  %v573 = vld [vmem:[%s2 + $0x108] sm:$0xff]
  %v574 = vld [vmem:[%s2 + $0x110] sm:$0xf]
  %v575 = vld [vmem:[%s2 + $0x116] sm:$0x1]
  %v576 = vperm.slane %v575, 0
  %vm577 = vcmask 490496
  %v579 = vsel %vm577, %v566, 0
  %vm581 = vcmask 1043456
  %v583 = vsel %vm581, %v574, 0
  %585 = vmatpush.msra.mxu0 0.0
  %586 = vmatpush.msra.mxu0 0.0
  %587 = vmatpush.msra.mxu0 0.0
  %588 = vmatpush.msra.mxu0 0.0
  %589 = vmatpush.msra.mxu0 0.0
  %590 = vmatpush.msra.mxu0 0.0
  %591 = vmatpush.msra.mxu0 0.0
  %592 = vmatpush.msra.mxu0 0.0
  %593 = vmatpush.msra.mxu0 %v583
  %594 = vmatpush.msra.mxu0 %v573
  %595 = vmatpush.msra.mxu0 %v572
  %596 = vmatpush.msra.mxu0 %v571
  %597 = vmatpush.msra.mxu0 %v570
  %598 = vmatpush.msra.mxu0 %v569
  %599 = vmatpush.msra.mxu0 %v568
  %600 = vmatpush.msra.mxu0 %v567
  %601 = vmatmul.f32.gmra.mxu0 %v579
  %v602 = vpop.f32.mrf.mxu0
  %v603 = vadd.f32 %v576, %v602
  %604 = vdwg.mxu0
  %605 = vst [vmem:[%s3] sm:$0xff] %v603
  // Predicated region
  $region14: #{cnn_forward.1} parent=0 // pred_check
    _
  $region15: #{cnn_forward.1} parent=0 // pred_check_branch
    %607 = sbr.rel (0) target = $region17
  $region16: #{cnn_forward.1} parent=0 // pred_region
    _
  $region17: #{cnn_forward.1} parent=0 // pred_fallthru
    _
  // Predicated region
  $region18: #{cnn_forward.1} parent=0 // pred_check
    _
  $region19: #{cnn_forward.1} parent=0 // pred_check_branch
    %609 = sbr.rel (0) target = $region21
  $region20: #{cnn_forward.1} parent=0 // pred_region
    _
  $region21: #{cnn_forward.1} parent=0 // pred_fallthru
    _

</llo_original>
